<compile_context>
chip_gen: v5e
topology: v5e:2x2
jax: 0.10.0
libtpu: 0.0.40
codegen_flags: <defaults>
</compile_context>

<pallas_src>
import functools

import jax
import jax.numpy as jnp
from jax.experimental import pallas as pl
from jax.experimental.pallas import tpu as pltpu


def _affine_kernel(x_ref, o_ref, *, gamma, beta):
    # Elementwise jitter on one (tile_r, cols) VMEM tile. Compute in f32 (safe on
    # v5e, which has no bf16 VPU path); the kernel is HBM-bandwidth bound either
    # way, so native bf16 compute on v6e/v7x would only save vreg pressure.
    x = x_ref[...]
    y = jnp.float32(gamma) * x.astype(jnp.float32) + jnp.float32(beta)
    o_ref[...] = y.astype(o_ref.dtype)


def _sublane_rows(dtype):
    """Packed sublane count per vreg for this dtype (8 f32, 16 bf16, 32 int8/fp8)."""
    return {4: 8, 2: 16, 1: 32}.get(jnp.dtype(dtype).itemsize, 8)


def _lane_dense_layout(total, sublane):
    """Pick (rows, cols, pad) with cols a multiple of 128 and, preferably, rows >= sublane.

    Returns the flat padding (in elements) needed; pad==0 whenever `total` factors cleanly.
    """
    fallback = None
    for lane in (2048, 1024, 512, 256, 128):
        if total % lane == 0:
            rows = total // lane
            if rows >= sublane:
                return rows, lane, 0        # lane-dense AND full sublanes
            if fallback is None:
                fallback = (rows, lane, 0)  # lane-dense but shallow; keep as backup
    if fallback is not None:
        return fallback
    # Awkward total: pad the flat length up to a multiple of 128 so stores stay
    # unmasked lane-dense (the pad region is transformed and sliced off afterwards).
    padded = ((total + 127) // 128) * 128
    return padded // 128, 128, padded - total


def _transform_pallas(x2, gamma, beta):
    """Tiled, software-pipelined gamma*x+beta over a lane-dense (rows, cols) slab."""
    rows, cols = x2.shape
    itemsize = jnp.dtype(x2.dtype).itemsize
    sub = _sublane_rows(x2.dtype)

    # ~8 MiB blocks: streams in ~2.5 us on v7x (3.2 TB/s) so the ~0.35 us fixed
    # per-grid-step cost is amortised; also comfortably at roofline on v5e/v6e.
    target_bytes = 8 * 1024 * 1024
    tile_r = max(sub, (target_bytes // max(1, cols * itemsize)) // sub * sub)

    if rows <= sub:
        tile_r = rows                      # tiny input: single full-extent block
    elif tile_r >= rows:
        # Whole slab fits in one target block. Still split into two row tiles when
        # possible so the v7x megacore can stream disjoint halves on its two TCs.
        if rows >= 2 * sub:
            tile_r = ((rows + 1) // 2 + sub - 1) // sub * sub
        else:
            tile_r = rows
    tile_r = min(tile_r, rows)
    grid = (pl.cdiv(rows, tile_r),)

    # in + out specs, double-buffered => ~4 blocks resident. Raise the scoped VMEM
    # limit (defaults: 16 MiB v5e, 32 MiB v6e/v7x) with headroom; cap at 48 MiB to
    # stay well under v7x's 64 MiB per-TC physical VMEM.
    block_bytes = tile_r * cols * itemsize
    vmem_limit = int(min(48 << 20, max(32 << 20, 4 * block_bytes + (4 << 20))))

    kernel = functools.partial(_affine_kernel, gamma=gamma, beta=beta)
    return pl.pallas_call(
        kernel,
        out_shape=jax.ShapeDtypeStruct((rows, cols), x2.dtype),
        grid=grid,
        in_specs=[pl.BlockSpec((tile_r, cols), lambda i: (i, 0))],
        out_specs=pl.BlockSpec((tile_r, cols), lambda i: (i, 0)),
        # Write in place: with a donated caller buffer the transform branch does a
        # single read + write and the identity branch can alias instead of copying.
        input_output_aliases={0: 0},
        compiler_params=pltpu.CompilerParams(
            dimension_semantics=("parallel",),   # row tiles shard across TCs on v7x
            vmem_limit_bytes=vmem_limit,
        ),
    )(x2)


def random_apply(x, seed, *, p, gamma=1.5, beta=0.1):
    """x: (N, C, H, W). Applies gamma*x+beta with probability p (single global draw).

    For maximum benefit, jit this with donate_argnums=(0,): the identity branch then
    aliases the input buffer (zero HBM traffic) and the transform branch updates in place.
    """
    orig_shape = x.shape
    total = 1
    for d in orig_shape:
        total *= d
    rows, cols, pad = _lane_dense_layout(total, _sublane_rows(x.dtype))

    flat = x.reshape(total)
    if pad:
        flat = jnp.pad(flat, (0, pad))
    x2 = flat.reshape(rows, cols)

    # Single Bernoulli draw, matching `self.p > torch.rand(1)`.
    u = jax.random.uniform(jax.random.PRNGKey(seed), (), dtype=jnp.float32)
    apply = u < jnp.float32(p)

    out2 = jax.lax.cond(
        apply,
        lambda v: _transform_pallas(v, gamma, beta),
        lambda v: v,                       # identity branch: no kernel launch
        x2,
    )
    out_flat = out2.reshape(rows * cols)
    if pad:
        out_flat = out_flat[:total]
    return out_flat.reshape(orig_shape)


if __name__ == "__main__":
    p = 0.7
    gamma, beta = 1.5, 0.1
    shape = (2, 4, 16, 16)

    def fresh_x():
        # Deterministic input; regenerated per call because the jitted wrappers
        # donate their input buffer (so aliasing/in-place update is actually legal).
        return jax.random.normal(jax.random.PRNGKey(0), shape, dtype=jnp.float32)

    x = fresh_x()                          # kept un-donated for reference checks
    transformed_ref = gamma * x + beta

    def make_fn(prob):
        return jax.jit(
            functools.partial(random_apply, p=prob, gamma=gamma, beta=beta),
            donate_argnums=(0,),
        )

    ra_p = make_fn(p)
    ra_0 = make_fn(0.0)
    ra_1 = make_fn(1.0)

    y = jax.block_until_ready(ra_p(fresh_x(), 0))

    # Sanity: output must equal either the identity or the transformed input.
    is_identity = bool(jnp.allclose(y, x, atol=1e-6))
    is_transform = bool(jnp.allclose(y, transformed_ref, atol=1e-5))
    assert is_identity or is_transform, "output is neither branch of RandomApply"

    # Degenerate probabilities must be deterministic.
    y0 = jax.block_until_ready(ra_0(fresh_x(), 1))
    y1 = jax.block_until_ready(ra_1(fresh_x(), 2))
    assert jnp.allclose(y0, x, atol=1e-6)
    assert jnp.allclose(y1, transformed_ref, atol=1e-5)

    print("KERNEL_OK")
</pallas_src>

<mosaic_0001>
module attributes {stable_mosaic.version = 11 : i64} {
  func.func @_affine_kernel(%arg0: i32, %arg1: memref<8x256xf32, #tpu.memory_space<vmem>>, %arg2: memref<8x256xf32, #tpu.memory_space<vmem>>) attributes {dimension_semantics = [#tpu.dimension_semantics<parallel>], iteration_bounds = array<i64: 1>, scalar_prefetch = 0 : i64, scratch_operands = 0 : i64, tpu.core_type = #tpu.core_type<tc>, window_params = [{transform_indices = @transform_0, window_bounds = array<i64: 8, 256>}, {transform_indices = @transform_1, window_bounds = array<i64: 8, 256>}]} {
    %c0 = arith.constant 0 : index
    %c0_0 = arith.constant 0 : index
    %0 = vector.load %arg1[%c0, %c0_0] : memref<8x256xf32, #tpu.memory_space<vmem>>, vector<8x256xf32>
    %cst = arith.constant 1.500000e+00 : f32
    %1 = vector.broadcast %cst : f32 to vector<8x256xf32>
    %2 = arith.mulf %1, %0 : vector<8x256xf32>
    %cst_1 = arith.constant 1.000000e-01 : f32
    %3 = vector.broadcast %cst_1 : f32 to vector<8x256xf32>
    %4 = arith.addf %2, %3 : vector<8x256xf32>
    %c0_2 = arith.constant 0 : index
    %c0_3 = arith.constant 0 : index
    %5 = vector.load %arg2[%c0_2, %c0_3] : memref<8x256xf32, #tpu.memory_space<vmem>>, vector<8x256xf32>
    tpu.vector_store %arg2[%c0_2, %c0_3], %4 {strides = array<i32>} : memref<8x256xf32, #tpu.memory_space<vmem>>, vector<8x256xf32>,
    return
  }
  func.func @transform_0(%arg0: i32) -> (i32, i32) {
    %c0_i32 = arith.constant 0 : i32
    %c0_i32_0 = arith.constant 0 : i32
    return %arg0, %c0_i32 : i32, i32
  }
  func.func @transform_1(%arg0: i32) -> (i32, i32) {
    %c0_i32 = arith.constant 0 : i32
    %c0_i32_0 = arith.constant 0 : i32
    return %arg0, %c0_i32 : i32, i32
  }
}

</mosaic_0001>

<llo_original>
// kernel: branch_1_fun.1
$region0: #{branch_1_fun.1}
  #allocation0 [shape = 'u32[]', space=smem, size = 0x4, offset = 0x4, fixed_abs, tag = 'smem constant byte address 0x4 - core index']
  #allocation1 [shape = 'u32[72,128]{1,0:T(1,128)}', space=vmem, size = 0x9000, scoped, tag = 'internal scratch']
  %s0 = inlined_call_operand.vmem [shape: f32[8,256], index: 0, kind: input, shape index: {}, may-alias: {0,1}]
  %s1 = inlined_call_operand.vmem [shape: f32[8,256], index: 1, kind: output, shape index: {}, may-alias: {0,1}]
  %s2 = sld [smem:[#allocation0]]
  $region14: #{branch_1_fun.1} parent=0
    _
  %s4 = ssub.s32 1, %s2
  %s5 = scalar_select 0, %s4, %s2
  // Predicated region
  $region2: #{branch_1_fun.1} parent=0 // pred_check
    _
  $region3: #{branch_1_fun.1} parent=0 // pred_check_branch
    %7 = sbr.rel (0) target = $region5
  $region4: #{branch_1_fun.1} parent=0 // pred_region
    _
  $region5: #{branch_1_fun.1} parent=0 // pred_fallthru
    _
  %v8 = vld [vmem:[%s0] sm:$0xff]
  %v9 = vld [vmem:[%s0 + $0x8] sm:$0xff]
  %v10 = vmul.f32 %v8, 1.5
  %v11 = vmul.f32 %v9, 1.5
  %v12 = vadd.f32 %v10, 0.1
  %v13 = vadd.f32 %v11, 0.1
  %14 = vst [vmem:[%s1] sm:$0xff] %v12
  %15 = vst [vmem:[%s1 + $0x8] sm:$0xff] %v13
  // Predicated region
  $region6: #{branch_1_fun.1} parent=0 // pred_check
    _
  $region7: #{branch_1_fun.1} parent=0 // pred_check_branch
    %17 = sbr.rel (0) target = $region9
  $region8: #{branch_1_fun.1} parent=0 // pred_region
    _
  $region9: #{branch_1_fun.1} parent=0 // pred_fallthru
    _
  // Predicated region
  $region10: #{branch_1_fun.1} parent=0 // pred_check
    _
  $region11: #{branch_1_fun.1} parent=0 // pred_check_branch
    %19 = sbr.rel (0) target = $region13
  $region12: #{branch_1_fun.1} parent=0 // pred_region
    _
  $region13: #{branch_1_fun.1} parent=0 // pred_fallthru
    _

</llo_original>
